<compile_context>
chip_gen: v5e
topology: v5e:2x2
jax: 0.10.0
libtpu: 0.0.40
codegen_flags: <defaults>
</compile_context>

<pallas_src>
import functools
import numpy as np

import jax
import jax.numpy as jnp
from jax.experimental import pallas as pl
from jax.experimental.pallas import tpu as pltpu


# ----------------------------------------------------------------------------
# Tunables / budgets
# ----------------------------------------------------------------------------
_SMALL_M = 64                # below this a pallas_call is pure overhead
_FULL_K_MAX = 6912           # <= this: single reduction step, weights VMEM-resident
_MAX_TK = 1536               # reduction tile when K must be grid-tiled
_VMEM_BUDGET = 24 * 2**20    # self-imposed tile budget (fits v5e/v6e/v7x)
_VMEM_LIMIT = 48 * 2**20     # scoped-VMEM limit handed to Mosaic


def _round_up(x, m):
    return -(-x // m) * m


# ----------------------------------------------------------------------------
# Runtime probe: is the lane-dense packed store (reshape (m,64)->(m/2,128))
# lowerable on this Mosaic build?  Probed once, eagerly, outside jit.
# ----------------------------------------------------------------------------
_PACK_OK = None


def _packed_store_supported():
    global _PACK_OK
    if _PACK_OK is None:
        def _probe_kernel(x_ref, o_ref):
            o_ref[...] = x_ref[...].reshape(o_ref.shape)
        try:
            x = jnp.arange(256 * 64, dtype=jnp.float32).reshape(256, 64)
            out = pl.pallas_call(
                _probe_kernel,
                out_shape=jax.ShapeDtypeStruct((128, 128), jnp.float32))(x)
            out = jax.block_until_ready(out)
            _PACK_OK = bool(jnp.array_equal(out, x.reshape(128, 128)))
        except Exception:          # reshape does not lower -> plain stores
            _PACK_OK = False
    return _PACK_OK


# ----------------------------------------------------------------------------
# Fused matmul kernel: maybe_relu((A @ W_scaled) + bias [+ residual])
#   - bf16 MXU inputs, fp32 accumulation
#   - multi_k: accumulate over a K grid axis (first step overwrites, no zero
#     init pass); single-k: dot feeds the epilogue directly (no scratch)
#   - pack>1: epilogue reshapes (tm, N) -> (tm/pack, N*pack) for lane-dense
#     stores when Cout < 128
# ----------------------------------------------------------------------------
def _fused_mm_kernel(*refs, relu, has_res, multi_k, pack):
    if has_res:
        a_ref, b_ref, c_ref, r_ref = refs[:4]
        rest = refs[4:]
    else:
        a_ref, b_ref, c_ref = refs[:3]
        r_ref = None
        rest = refs[3:]
    o_ref = rest[0]
    acc_ref = rest[1] if multi_k else None

    part = jnp.dot(a_ref[...], b_ref[...], preferred_element_type=jnp.float32)

    def _epilogue(acc):
        if pack > 1:
            acc = acc.reshape(acc.shape[0] // pack, acc.shape[1] * pack)
        y = acc + c_ref[...]
        if r_ref is not None:
            y = y + r_ref[...].astype(jnp.float32)
        if relu:
            y = jnp.maximum(y, 0.0)
        o_ref[...] = y.astype(o_ref.dtype)

    if multi_k:
        k = pl.program_id(2)

        @pl.when(k == 0)
        def _():
            acc_ref[...] = part        # no separate zero-init pass

        @pl.when(k > 0)
        def _():
            acc_ref[...] += part

        @pl.when(k == pl.num_programs(2) - 1)
        def _():
            _epilogue(acc_ref[...])
    else:
        _epilogue(part)


# ----------------------------------------------------------------------------
# Tile planning (shapes are static -> plain Python)
# ----------------------------------------------------------------------------
def _vmem_bytes(tm, tk, tn, n_buf_k, multi_k, has_res):
    a = n_buf_k * tm * tk * 2           # bf16 A, multi-buffered
    b = n_buf_k * tk * tn * 2           # bf16 W
    out = 2 * tm * tn * 2               # bf16 out, double-buffered
    res = 2 * tm * tn * 2 if has_res else 0
    acc = tm * tn * 4 if multi_k else 0
    bias = 2 * 128 * 4
    return a + b + out + res + acc + bias


def _plan_tiles(M, K, N, has_res):
    """Pick (tm, Mp, tk, Kp, k_buffers).  tn always spans the full Cout."""
    tn = N
    if K <= _FULL_K_MAX:
        # Single reduction step: the B block index is constant over the grid,
        # so the weights are DMA'd into VMEM once and stay resident.
        k_opts = [(K, K, 2)]
    else:
        Kp = K if K % 128 == 0 else _round_up(K, 128)   # guard only
        k_opts = [(tk, Kp, 3) for tk in range(_MAX_TK, 127, -128)
                  if Kp % tk == 0]
        if not k_opts:
            k_opts = [(128, Kp, 3)]
    for tk, Kp, n_buf in k_opts:
        multi_k = Kp != tk
        cands = [tm for tm in (512, 256, 128, 64)
                 if M % tm == 0
                 and _vmem_bytes(tm, tk, tn, n_buf, multi_k, has_res)
                 <= _VMEM_BUDGET]
        if cands:
            # prefer the largest tm that still leaves >=2 row blocks so both
            # v7x TensorCores get grid work; otherwise the largest tm.
            pref = [tm for tm in cands if M // tm >= 2]
            tm = pref[0] if pref else cands[0]
            return tm, M, tk, Kp, n_buf
    # Guard fallback (never hit by this network): pad + smallest tiles.
    return 64, _round_up(M, 64), 128, _round_up(K, 128), 2


# ----------------------------------------------------------------------------
# Fused matmul wrapper
# ----------------------------------------------------------------------------
def fused_matmul(a, b, bias, residual=None, relu=True, out_dtype=jnp.bfloat16):
    """maybe_relu(a @ b + bias [+ residual]).

    a:(M,K)  b:(K,N) (BN scale already folded in)  bias:(N,)  residual:(M,N).
    """
    M, K = a.shape
    K2, N = b.shape
    assert K == K2 and bias.shape == (N,)
    bias = bias.astype(jnp.float32)

    if M < _SMALL_M:
        # Tiny late-stage matmuls / fc head: plain XLA dot is cheaper.
        y = jnp.dot(a.astype(jnp.float32), b.astype(jnp.float32),
                    preferred_element_type=jnp.float32) + bias[None, :]
        if residual is not None:
            y = y + residual.astype(jnp.float32)
        if relu:
            y = jnp.maximum(y, 0.0)
        return y.astype(out_dtype)

    a = a.astype(jnp.bfloat16)
    b = b.astype(jnp.bfloat16)
    has_res = residual is not None

    tm, Mp, tk, Kp, n_buf_k = _plan_tiles(M, K, N, has_res)
    tn = N
    multi_k = Kp != tk

    if Kp != K:                                  # guard only (never hit here)
        a = jnp.pad(a, ((0, 0), (0, Kp - K)))
        b = jnp.pad(b, ((0, Kp - K), (0, 0)))
    if Mp != M:                                  # guard only
        a = jnp.pad(a, ((0, Mp - M), (0, 0)))
        if has_res:
            residual = jnp.pad(residual, ((0, Mp - M), (0, 0)))

    # Lane-dense packed output for narrow Cout (stem / layer1: N == 64).
    pack = 1
    if N < 128 and 128 % N == 0:
        p = 128 // N
        if tm % p == 0 and Mp % p == 0 and _PACK_OK:
            pack = p

    bias_row = (jnp.tile(bias, pack) if pack > 1 else bias).reshape(1, N * pack)

    grid = (Mp // tm, N // tn, Kp // tk)

    if multi_k:
        a_spec = pl.BlockSpec((tm, tk), lambda i, j, k: (i, k),
                              pipeline_mode=pl.Buffered(n_buf_k))
        b_spec = pl.BlockSpec((tk, tn), lambda i, j, k: (k, j),
                              pipeline_mode=pl.Buffered(n_buf_k))
    else:
        a_spec = pl.BlockSpec((tm, tk), lambda i, j, k: (i, k))
        b_spec = pl.BlockSpec((tk, tn), lambda i, j, k: (k, j))

    in_specs = [a_spec, b_spec,
                pl.BlockSpec((1, N * pack), lambda i, j, k: (0, j))]
    args = [a, b, bias_row]

    if has_res:
        res = residual.astype(jnp.bfloat16)
        if pack > 1:
            res = res.reshape(Mp // pack, N * pack)
        in_specs.append(
            pl.BlockSpec((tm // pack, tn * pack), lambda i, j, k: (i, j)))
        args.append(res)

    out_spec = pl.BlockSpec((tm // pack, tn * pack), lambda i, j, k: (i, j))
    out_shape = jax.ShapeDtypeStruct((Mp // pack, N * pack), out_dtype)
    scratch = [pltpu.VMEM((tm, tn), jnp.float32)] if multi_k else []

    kernel = functools.partial(_fused_mm_kernel, relu=relu, has_res=has_res,
                               multi_k=multi_k, pack=pack)

    out = pl.pallas_call(
        kernel,
        out_shape=out_shape,
        grid_spec=pltpu.PrefetchScalarGridSpec(
            num_scalar_prefetch=0,
            grid=grid,
            in_specs=in_specs,
            out_specs=out_spec,
            scratch_shapes=scratch,
        ),
        compiler_params=pltpu.CompilerParams(
            dimension_semantics=("parallel", "parallel", "arbitrary"),
            vmem_limit_bytes=_VMEM_LIMIT),
    )(*args)

    if pack > 1:
        out = out.reshape(Mp, N)
    return out[:M] if Mp != M else out


# ----------------------------------------------------------------------------
# Conv3d (+BN+ReLU+residual) via channels-last im2col + fused Pallas matmul
# ----------------------------------------------------------------------------
def _im2col(x, ksize, stride, padding):
    """x: (N, D, H, W, C) -> (N*Do*Ho*Wo, kd*kh*kw*C), channels fastest."""
    N, D, H, W, C = x.shape
    kd, kh, kw = ksize
    sd, sh, sw = stride
    pd, ph, pw = padding
    x_p = jnp.pad(x, ((0, 0), (pd, pd), (ph, ph), (pw, pw), (0, 0)))
    Do = (D + 2 * pd - kd) // sd + 1
    Ho = (H + 2 * ph - kh) // sh + 1
    Wo = (W + 2 * pw - kw) // sw + 1
    patches = []
    for a in range(kd):
        for b in range(kh):
            for c in range(kw):
                patches.append(
                    x_p[:,
                        a: a + sd * (Do - 1) + 1: sd,
                        b: b + sh * (Ho - 1) + 1: sh,
                        c: c + sw * (Wo - 1) + 1: sw, :])
    p = jnp.stack(patches, axis=4)              # (N, Do, Ho, Wo, Kk, C)
    a_mat = p.reshape(N * Do * Ho * Wo, kd * kh * kw * C)
    # TODO(synk): fuse the patch extraction into the matmul kernel (decompose
    # the K grid axis into (kd,kh,kw,Cin) steps reading windows of the padded
    # NDHWC input) to avoid materializing the im2col matrix in HBM.
    return a_mat, (N, Do, Ho, Wo)


def conv3d_bn(x, w, scale, bias, stride, padding, relu=True, residual=None):
    """x:(N,D,H,W,Cin) bf16, w:(Cout,Cin,kd,kh,kw) -> (N,Do,Ho,Wo,Cout) bf16."""
    Cout, Cin, kd, kh, kw = w.shape
    a_mat, (N, Do, Ho, Wo) = _im2col(x, (kd, kh, kw), stride, padding)
    # (kd,kh,kw,Cin,Cout) flattened to match im2col K ordering; BN scale folded
    # into the weights here (tiny, outside the hot kernel).
    w_mat = jnp.transpose(w, (2, 3, 4, 1, 0)).reshape(kd * kh * kw * Cin, Cout)
    w_mat = (w_mat * scale[None, :]).astype(jnp.bfloat16)
    res_mat = None if residual is None else residual.reshape(-1, Cout)
    out = fused_matmul(a_mat, w_mat, bias, residual=res_mat, relu=relu,
                       out_dtype=jnp.bfloat16)
    return out.reshape(N, Do, Ho, Wo, Cout)


# ----------------------------------------------------------------------------
# Deterministic parameter init (r3d_18 architecture, new fc head)
# ----------------------------------------------------------------------------
def init_params(key, num_classes):
    keys = iter(jax.random.split(key, 256))
    eps = 1e-5

    def conv_bn_p(cin, cout, ksize):
        fan_in = cin * int(np.prod(ksize))
        w = jax.random.normal(next(keys), (cout, cin) + tuple(ksize),
                              jnp.float32) * np.sqrt(2.0 / fan_in)
        gamma = 1.0 + 0.1 * jax.random.normal(next(keys), (cout,), jnp.float32)
        beta = 0.1 * jax.random.normal(next(keys), (cout,), jnp.float32)
        # eval-mode BN fold with running_mean=0, running_var=1
        scale = gamma / jnp.sqrt(1.0 + eps)
        bias = beta
        return {"w": w, "scale": scale, "bias": bias}

    params = {"stem": conv_bn_p(3, 64, (3, 7, 7))}

    layers = []
    in_c = 64
    for li, cout in enumerate([64, 128, 256, 512]):
        blocks = []
        for bi in range(2):
            stride = 2 if (li > 0 and bi == 0) else 1
            blk = {
                "conv1": conv_bn_p(in_c, cout, (3, 3, 3)),
                "conv2": conv_bn_p(cout, cout, (3, 3, 3)),
            }
            if stride != 1 or in_c != cout:
                blk["downsample"] = conv_bn_p(in_c, cout, (1, 1, 1))
            blocks.append(blk)
            in_c = cout
        layers.append(blocks)
    params["layers"] = layers

    bound = 1.0 / np.sqrt(512.0)
    params["fc_w"] = jax.random.uniform(next(keys), (num_classes, 512),
                                        jnp.float32, -bound, bound)
    params["fc_b"] = jax.random.uniform(next(keys), (num_classes,),
                                        jnp.float32, -bound, bound)
    return params


# ----------------------------------------------------------------------------
# Forward pass (r3d_18 with replaced fc)
# ----------------------------------------------------------------------------
def basic_block(x, blk, stride):
    if "downsample" in blk:
        ds = blk["downsample"]
        identity = conv3d_bn(x, ds["w"], ds["scale"], ds["bias"],
                             (stride, stride, stride), (0, 0, 0), relu=False)
    else:
        identity = x
    c1 = blk["conv1"]
    out = conv3d_bn(x, c1["w"], c1["scale"], c1["bias"],
                    (stride, stride, stride), (1, 1, 1), relu=True)
    c2 = blk["conv2"]
    # fused: relu(bn2(conv2(out)) + identity)
    out = conv3d_bn(out, c2["w"], c2["scale"], c2["bias"],
                    (1, 1, 1), (1, 1, 1), relu=True, residual=identity)
    return out


def resnet3d_forward(params, x):
    # NCDHW (PyTorch layout) -> NDHWC once; bf16 activations end-to-end.
    x = jnp.transpose(x, (0, 2, 3, 4, 1)).astype(jnp.bfloat16)
    st = params["stem"]
    x = conv3d_bn(x, st["w"], st["scale"], st["bias"],
                  stride=(1, 2, 2), padding=(1, 3, 3), relu=True)
    for li, blocks in enumerate(params["layers"]):
        for bi, blk in enumerate(blocks):
            stride = 2 if (li > 0 and bi == 0) else 1
            x = basic_block(x, blk, stride)
    # AdaptiveAvgPool3d((1,1,1)) == global mean over (D,H,W): tiny reduction,
    # kept in plain JAX glue.
    feat = jnp.mean(x.astype(jnp.float32), axis=(1, 2, 3))       # (N, 512)
    logits = fused_matmul(feat, params["fc_w"].T.astype(jnp.float32),
                          params["fc_b"], relu=False,
                          out_dtype=jnp.float32)                 # (N, classes)
    return logits


# ----------------------------------------------------------------------------
if __name__ == "__main__":
    num_classes = 10
    key = jax.random.PRNGKey(0)
    pkey, xkey, tkey = jax.random.split(key, 3)

    # Probe the packed-store reshape once, eagerly, before any jit tracing.
    _packed_store_supported()

    def _rel_err(got, want):
        return float(jnp.max(jnp.abs(got - want)) /
                     (jnp.max(jnp.abs(want)) + 1e-6))

    ka, kb, kr = jax.random.split(tkey, 3)

    # (1) single-K-step path, narrow Cout (exercises the lane-dense packed
    #     store when supported).
    a1 = jax.random.normal(ka, (256, 441), jnp.float32).astype(jnp.bfloat16)
    b1 = jax.random.normal(kb, (441, 64), jnp.float32).astype(jnp.bfloat16)
    c1 = 0.1 * jnp.arange(64, dtype=jnp.float32)
    got1 = fused_matmul(a1, b1, c1, relu=True, out_dtype=jnp.float32)
    want1 = jnp.maximum(
        jnp.dot(a1.astype(jnp.float32), b1.astype(jnp.float32)) + c1[None, :],
        0.0)
    assert _rel_err(got1, want1) < 1e-2, f"single-K mismatch: {_rel_err(got1, want1)}"

    # (2) K-tiled (multi-step, Buffered) path with fused residual.
    a2 = jax.random.normal(ka, (128, 7040), jnp.float32).astype(jnp.bfloat16)
    b2 = jax.random.normal(kb, (7040, 128), jnp.float32).astype(jnp.bfloat16)
    c2 = 0.05 * jnp.arange(128, dtype=jnp.float32)
    r2 = jax.random.normal(kr, (128, 128), jnp.float32).astype(jnp.bfloat16)
    got2 = fused_matmul(a2, b2, c2, residual=r2, relu=True,
                        out_dtype=jnp.float32)
    want2 = jnp.maximum(
        jnp.dot(a2.astype(jnp.float32), b2.astype(jnp.float32)) + c2[None, :]
        + r2.astype(jnp.float32), 0.0)
    assert _rel_err(got2, want2) < 1e-2, f"multi-K mismatch: {_rel_err(got2, want2)}"

    params = init_params(pkey, num_classes)

    # small video clip: (batch=2, channels=3, frames=8, H=16, W=16)
    x = jax.random.normal(xkey, (2, 3, 8, 16, 16), jnp.float32)

    logits = jax.jit(resnet3d_forward)(params, x)
    logits = jax.block_until_ready(logits)

    assert logits.shape == (2, num_classes), logits.shape
    assert bool(jnp.all(jnp.isfinite(logits)))
    print("KERNEL_OK")
</pallas_src>

<mosaic_0001>
module attributes {stable_mosaic.version = 11 : i64} {
  func.func @_probe_kernel(%arg0: memref<256x64xf32, #tpu.memory_space<vmem>>, %arg1: memref<128x128xf32, #tpu.memory_space<vmem>>) attributes {dimension_semantics = [], scalar_prefetch = 0 : i64, scratch_operands = 0 : i64, tpu.core_type = #tpu.core_type<tc>} {
    %c0 = arith.constant 0 : index
    %c0_0 = arith.constant 0 : index
    %0 = vector.load %arg0[%c0, %c0_0] : memref<256x64xf32, #tpu.memory_space<vmem>>, vector<256x64xf32>
    %1 = vector.shape_cast %0 : vector<256x64xf32> to vector<128x128xf32>
    %c0_1 = arith.constant 0 : index
    %c0_2 = arith.constant 0 : index
    %2 = vector.load %arg1[%c0_1, %c0_2] : memref<128x128xf32, #tpu.memory_space<vmem>>, vector<128x128xf32>
    tpu.vector_store %arg1[%c0_1, %c0_2], %1 {strides = array<i32>} : memref<128x128xf32, #tpu.memory_space<vmem>>, vector<128x128xf32>,
    return
  }
}

module attributes {stable_mosaic.version = 11 : i64} {
  func.func @_fused_mm_kernel(%arg0: i32, %arg1: i32, %arg2: i32, %arg3: memref<128x441xbf16, #tpu.memory_space<vmem>>, %arg4: memref<441x64xbf16, #tpu.memory_space<vmem>>, %arg5: memref<1x64xf32, #tpu.memory_space<vmem>>, %arg6: memref<128x64xf32, #tpu.memory_space<vmem>>) attributes {dimension_semantics = [#tpu.dimension_semantics<parallel>, #tpu.dimension_semantics<parallel>, #tpu.dimension_semantics<arbitrary>], iteration_bounds = array<i64: 2, 1, 1>, scalar_prefetch = 0 : i64, scratch_operands = 0 : i64, tpu.core_type = #tpu.core_type<tc>, window_params = [{transform_indices = @transform_0, window_bounds = array<i64: 128, 441>}, {transform_indices = @transform_1, window_bounds = array<i64: 441, 64>}, {transform_indices = @transform_2, window_bounds = array<i64: 1, 64>}, {transform_indices = @transform_3, window_bounds = array<i64: 128, 64>}]} {
    %c0 = arith.constant 0 : index
    %c0_0 = arith.constant 0 : index
    %0 = vector.load %arg3[%c0, %c0_0] : memref<128x441xbf16, #tpu.memory_space<vmem>>, vector<128x441xbf16>
    %c0_1 = arith.constant 0 : index
    %c0_2 = arith.constant 0 : index
    %1 = vector.load %arg4[%c0_1, %c0_2] : memref<441x64xbf16, #tpu.memory_space<vmem>>, vector<441x64xbf16>
    %cst = arith.constant dense<0.000000e+00> : vector<128x64xf32>
    %2 = tpu.matmul %0, %1, %cst {dimension_numbers = #tpu.dot_dimension_numbers<[1], [0], [0], [1], [0, 0, 1, 1], [], []>} : vector<128x441xbf16>, vector<441x64xbf16>, vector<128x64xf32> -> vector<128x64xf32>
    %c0_3 = arith.constant 0 : index
    %c0_4 = arith.constant 0 : index
    %3 = vector.load %arg5[%c0_3, %c0_4] : memref<1x64xf32, #tpu.memory_space<vmem>>, vector<1x64xf32>
    %4 = vector.broadcast %3 : vector<1x64xf32> to vector<128x64xf32>
    %5 = arith.addf %2, %4 : vector<128x64xf32>
    %cst_5 = arith.constant 0.000000e+00 : f32
    %6 = vector.broadcast %cst_5 : f32 to vector<128x64xf32>
    %7 = arith.maximumf %5, %6 : vector<128x64xf32>
    %c0_6 = arith.constant 0 : index
    %c0_7 = arith.constant 0 : index
    %8 = vector.load %arg6[%c0_6, %c0_7] : memref<128x64xf32, #tpu.memory_space<vmem>>, vector<128x64xf32>
    tpu.vector_store %arg6[%c0_6, %c0_7], %7 {strides = array<i32>} : memref<128x64xf32, #tpu.memory_space<vmem>>, vector<128x64xf32>,
    return
  }
  func.func @transform_0(%arg0: i32, %arg1: i32, %arg2: i32) -> (i32, i32) {
    %c0_i32 = arith.constant 0 : i32
    return %arg0, %arg2 : i32, i32
  }
  func.func @transform_1(%arg0: i32, %arg1: i32, %arg2: i32) -> (i32, i32) {
    %c0_i32 = arith.constant 0 : i32
    return %arg2, %arg1 : i32, i32
  }
  func.func @transform_2(%arg0: i32, %arg1: i32, %arg2: i32) -> (i32, i32) {
    %c0_i32 = arith.constant 0 : i32
    %c0_i32_0 = arith.constant 0 : i32
    return %c0_i32, %arg1 : i32, i32
  }
  func.func @transform_3(%arg0: i32, %arg1: i32, %arg2: i32) -> (i32, i32) {
    %c0_i32 = arith.constant 0 : i32
    return %arg0, %arg1 : i32, i32
  }
}

</mosaic_0001>

<llo_original>
// kernel: tpu_custom_call.1
$region0: #{tpu_custom_call.1}
  #allocation0 [shape = 'u32[]', space=smem, size = 0x4, offset = 0x4, fixed_abs, tag = 'smem constant byte address 0x4 - core index']
  #allocation1 [shape = 'u32[72,128]{1,0:T(1,128)}', space=vmem, size = 0x9000, scoped, tag = 'internal scratch']
  %s0 = inlined_call_operand.vmem [shape: bf16[256,441], index: 0, kind: input, shape index: {}]
  %s1 = inlined_call_operand.vmem [shape: bf16[441,64], index: 1, kind: input, shape index: {}]
  %s2 = inlined_call_operand.vmem [shape: f32[1,64], index: 2, kind: input, shape index: {}]
  %s3 = inlined_call_operand.vmem [shape: f32[256,64], index: 3, kind: output, shape index: {}]
  %s4 = sld [smem:[#allocation0]]
  $region45: #{tpu_custom_call.1} parent=0
    _
  %s6 = ssub.s32 1, %s4
  %s7 = scalar_select 0, %s6, %s4
  loop: start=0, step=1, limit=4
  $region2: #{tpu_custom_call.1} parent=0 // loop_pre_header
    _
  $region3: #{tpu_custom_call.1} parent=0 // loop_header
    %s9 = sphi 0, %s13
    %p10 = scmp.ge.s32.totalorder %s9, 4
    %s16 = sphi 0, %s35
    %s17 = sphi 0, %s31
    %s18 = sphi 0, %s27
    %s19 = sphi 0, %s16
    %s20 = sphi 0, %s17
    %s21 = sphi 0, %s18
    %s22 = sphi 0, %s19
    %s23 = sphi 0, %s20
    %s24 = sphi 0, %s21
    %s40 = sphi 0, %s42
    %s43 = sphi 0, %s40
    %s44 = sphi 0, %s43
    %s60 = sphi 0, %s44
    %s68 = sphi 0, %s70
    %s71 = sphi 0, %s68
    %s72 = sphi 0, %s71
    %s88 = sphi 0, %s72
    %s94 = sphi 0, %s96
    %s97 = sphi 0, %s94
    %s98 = sphi 0, %s97
    %s114 = sphi 0, %s98
    %s122 = sphi 0, %s124
    %s125 = sphi 0, %s122
    %s126 = sphi 0, %s125
    %s142 = sphi 0, %s126
  $region4: #{tpu_custom_call.1} parent=0 // loop_header_branch
    %12 = sbr.rel (%p10) target = $region8
  $region5: #{tpu_custom_call.1} parent=0 // loop_body
    %s14 = ssub.s32 %s9, 1
    %s15 = ssub.s32 %s9, 2
    %s25 = sadd.s32 1, %s18
    %p26 = scmp.ge.s32.totalorder %s25, 1
    %s27 = scalar_select %p26, 0, %s25
    %s28 = sadd.s32 1, %s17
    %s29 = scalar_select %p26, %s28, %s17
    %p30 = scmp.ge.s32.totalorder %s29, 1
    %s31 = scalar_select %p30, 0, %s29
    %s32 = sadd.s32 1, %s16
    %s33 = scalar_select %p30, %s32, %s16
    %p34 = scmp.ge.s32.totalorder %s33, 2
    %s35 = scalar_select %p34, 0, %s33
    %s36 = ssub.s32 %s16, %s35
    %s37 = ssub.s32 %s18, %s27
    %s38 = sor.u32 %s36, %s37
    %p39 = scmp.eq.s32.totalorder %s38, 0
    %s41 = sadd.s32 %s40, 1
    %s42 = scalar_select %p39, %s40, %s41
    %p45 = pneg %p39
    %p46 = scmp.eq.s32.totalorder %s9, 1
    %p47 = por %p45, %p46
    %p48 = scmp.ne.s32.totalorder %s40, %s43
    %p49 = scmp.eq.s32.totalorder %s9, 0
    %p50 = por %p48, %p49
    %p51 = scmp.ne.s32.totalorder %s40, %s43
    %p52 = scmp.eq.s32.totalorder %s14, 1
    %p53 = por %p51, %p52
    %p54 = scmp.ne.s32.totalorder %s43, %s44
    %p55 = scmp.eq.s32.totalorder %s14, 0
    %p56 = por %p54, %p55
    %p57 = scmp.ne.s32.totalorder %s43, %s44
    %p58 = scmp.eq.s32.totalorder %s15, 1
    %p59 = por %p57, %p58
    %p61 = scmp.ne.s32.totalorder %s44, %s60
    %p62 = scmp.eq.s32.totalorder %s15, 0
    %p63 = por %p61, %p62
    %s64 = ssub.s32 %s18, %s27
    %s65 = ssub.s32 %s17, %s31
    %s66 = sor.u32 %s64, %s65
    %p67 = scmp.eq.s32.totalorder %s66, 0
    %s69 = sadd.s32 %s68, 1
    %s70 = scalar_select %p67, %s68, %s69
    %p73 = pneg %p67
    %p74 = scmp.eq.s32.totalorder %s9, 1
    %p75 = por %p73, %p74
    %p76 = scmp.ne.s32.totalorder %s68, %s71
    %p77 = scmp.eq.s32.totalorder %s9, 0
    %p78 = por %p76, %p77
    %p79 = scmp.ne.s32.totalorder %s68, %s71
    %p80 = scmp.eq.s32.totalorder %s14, 1
    %p81 = por %p79, %p80
    %p82 = scmp.ne.s32.totalorder %s71, %s72
    %p83 = scmp.eq.s32.totalorder %s14, 0
    %p84 = por %p82, %p83
    %p85 = scmp.ne.s32.totalorder %s71, %s72
    %p86 = scmp.eq.s32.totalorder %s15, 1
    %p87 = por %p85, %p86
    %p89 = scmp.ne.s32.totalorder %s72, %s88
    %p90 = scmp.eq.s32.totalorder %s15, 0
    %p91 = por %p89, %p90
    %s92 = ssub.s32 %s17, %s31
    %p93 = scmp.eq.s32.totalorder %s92, 0
    %s95 = sadd.s32 %s94, 1
    %s96 = scalar_select %p93, %s94, %s95
    %p99 = pneg %p93
    %p100 = scmp.eq.s32.totalorder %s9, 1
    %p101 = por %p99, %p100
    %p102 = scmp.ne.s32.totalorder %s94, %s97
    %p103 = scmp.eq.s32.totalorder %s9, 0
    %p104 = por %p102, %p103
    %p105 = scmp.ne.s32.totalorder %s94, %s97
    %p106 = scmp.eq.s32.totalorder %s14, 1
    %p107 = por %p105, %p106
    %p108 = scmp.ne.s32.totalorder %s97, %s98
    %p109 = scmp.eq.s32.totalorder %s14, 0
    %p110 = por %p108, %p109
    %p111 = scmp.ne.s32.totalorder %s97, %s98
    %p112 = scmp.eq.s32.totalorder %s15, 1
    %p113 = por %p111, %p112
    %p115 = scmp.ne.s32.totalorder %s98, %s114
    %p116 = scmp.eq.s32.totalorder %s15, 0
    %p117 = por %p115, %p116
    %s118 = ssub.s32 %s16, %s35
    %s119 = ssub.s32 %s17, %s31
    %s120 = sor.u32 %s118, %s119
    %p121 = scmp.eq.s32.totalorder %s120, 0
    %s123 = sadd.s32 %s122, 1
    %s124 = scalar_select %p121, %s122, %s123
    %p127 = pneg %p121
    %p128 = scmp.eq.s32.totalorder %s9, 1
    %p129 = por %p127, %p128
    %p130 = scmp.ne.s32.totalorder %s122, %s125
    %p131 = scmp.eq.s32.totalorder %s9, 0
    %p132 = por %p130, %p131
    %p133 = scmp.ne.s32.totalorder %s122, %s125
    %p134 = scmp.eq.s32.totalorder %s14, 1
    %p135 = por %p133, %p134
    %p136 = scmp.ne.s32.totalorder %s125, %s126
    %p137 = scmp.eq.s32.totalorder %s14, 0
    %p138 = por %p136, %p137
    %p139 = scmp.ne.s32.totalorder %s125, %s126
    %p140 = scmp.eq.s32.totalorder %s15, 1
    %p141 = por %p139, %p140
    %p143 = scmp.ne.s32.totalorder %s126, %s142
    %p144 = scmp.eq.s32.totalorder %s15, 0
    %p145 = por %p143, %p144
    %p146 = scmp.le.s32.totalorder 1, %s9
    %p147 = scmp.lt.s32.totalorder %s9, 3
    %p148 = pnand %p146, %p147
    %p149 = pneg %p148
    // Predicated region
    $region9: #{tpu_custom_call.1} parent=5 // pred_check
      _
    $region10: #{tpu_custom_call.1} parent=5 // pred_check_branch
      %151 = sbr.rel (%p148) target = $region12
    $region11: #{tpu_custom_call.1} parent=5 // pred_region
      %s152 = ssub.s32 %s9, 1
      // Predicated region
      $region13: #{tpu_custom_call.1} parent=11 // pred_check
        %p153 = pneg %p84
      $region14: #{tpu_custom_call.1} parent=11 // pred_check_branch
        %155 = sbr.rel (%p153) target = $region16
      $region15: #{tpu_custom_call.1} parent=11 // pred_region
        %s156 = smul.u32 56, %s21
        %p157 = scmp.lt.s32.totalorder %s156, 55
        %s158 = scalar_select %p157, %s156, 55
        %p159 = scmp.lt.s32.totalorder %s20, 0
        %s160 = scalar_select %p159, %s20, 0
        %s161 = sadd.s32 %s160, %s158
        %s162 = smul.addr %s161, 4
        %s163 = scalar_lea.vmem %s1, %s162
        %s164 = smul.u32 56, %s21
      $region16: #{tpu_custom_call.1} parent=11 // pred_fallthru
        _
      // Predicated region
      $region17: #{tpu_custom_call.1} parent=11 // pred_check
        %p165 = pneg %p110
      $region18: #{tpu_custom_call.1} parent=11 // pred_check_branch
        %167 = sbr.rel (%p165) target = $region20
      $region19: #{tpu_custom_call.1} parent=11 // pred_region
        %p168 = scmp.lt.s32.totalorder %s20, 0
        %s169 = scalar_select %p168, %s20, 0
        %s170 = scalar_lea.vmem %s2, %s169
      $region20: #{tpu_custom_call.1} parent=11 // pred_fallthru
        _
    $region12: #{tpu_custom_call.1} parent=5 // pred_fallthru
      _
    %p171 = scmp.lt.s32.totalorder %s9, 2
    // Predicated region
    $region21: #{tpu_custom_call.1} parent=5 // pred_check
      %p172 = pneg %p171
    $region22: #{tpu_custom_call.1} parent=5 // pred_check_branch
      %174 = sbr.rel (%p172) target = $region24
    $region23: #{tpu_custom_call.1} parent=5 // pred_region
      // Predicated region
      $region25: #{tpu_custom_call.1} parent=23 // pred_check
        %p175 = pneg %p50
      $region26: #{tpu_custom_call.1} parent=23 // pred_check_branch
        %177 = sbr.rel (%p175) target = $region28
      $region27: #{tpu_custom_call.1} parent=23 // pred_region
        %s178 = smul.u32 16, %s16
        %s179 = smul.u32 4, %s18
        %p180 = scmp.lt.s32.totalorder %s178, 31
        %s181 = scalar_select %p180, %s178, 31
        %p182 = scmp.lt.s32.totalorder %s179, 3
        %s183 = scalar_select %p182, %s179, 3
        %s184 = smul.addr %s181, 4
        %s185 = sadd.s32 %s183, %s184
        %s186 = smul.addr %s185, 4
        %s187 = scalar_lea.vmem %s0, %s186
        %s188 = smul.u32 16, %s16
        %s189 = smul.u32 4, %s18
      $region28: #{tpu_custom_call.1} parent=23 // pred_fallthru
        _
    $region24: #{tpu_custom_call.1} parent=5 // pred_fallthru
      _
    %p190 = scmp.le.s32.totalorder 1, %s9
    %p191 = scmp.lt.s32.totalorder %s9, 3
    %p192 = pnand %p190, %p191
    %p193 = pneg %p192
    // Predicated region
    $region29: #{tpu_custom_call.1} parent=5 // pred_check
      _
    $region30: #{tpu_custom_call.1} parent=5 // pred_check_branch
      %195 = sbr.rel (%p192) target = $region32
    $region31: #{tpu_custom_call.1} parent=5 // pred_region
      %s196 = ssub.s32 %s9, 1
      %s197 = smul.u32 16, %s19
      %s198 = smul.u32 4, %s21
      %p199 = scmp.lt.s32.totalorder %s197, 31
      %s200 = scalar_select %p199, %s197, 31
      %p201 = scmp.lt.s32.totalorder %s198, 3
      %s202 = scalar_select %p201, %s198, 3
      %s203 = smul.addr %s200, 4
      %s204 = sadd.s32 %s202, %s203
      %s205 = smul.addr %s204, 4
      %s206 = scalar_lea.vmem %s0, %s205
      %p207 = pneg %p56
      %p208 = pneg %p53
      %s209 = smul.u32 56, %s21
      %p210 = scmp.lt.s32.totalorder %s209, 55
      %s211 = scalar_select %p210, %s209, 55
      %p212 = scmp.lt.s32.totalorder %s20, 0
      %s213 = scalar_select %p212, %s20, 0
      %s214 = sadd.s32 %s213, %s211
      %s215 = smul.addr %s214, 4
      %s216 = scalar_lea.vmem %s1, %s215
      %p217 = pneg %p84
      %p218 = pneg %p81
      %p219 = scmp.lt.s32.totalorder %s20, 0
      %s220 = scalar_select %p219, %s20, 0
      %s221 = scalar_lea.vmem %s2, %s220
      %p222 = pneg %p110
      %p223 = pneg %p107
      %p224 = pneg %p138
      %p225 = pneg %p135
      %s226 = smul.u32 16, %s19
      %p227 = scmp.lt.s32.totalorder %s226, 31
      %s228 = scalar_select %p227, %s226, 31
      %p229 = scmp.lt.s32.totalorder %s20, 0
      %s230 = scalar_select %p229, %s20, 0
      %s231 = sadd.s32 %s230, %s228
      %s232 = smul.addr %s231, 8
      %s233 = scalar_lea.vmem %s3, %s232
      %s234 = smul.u32 16, %s19
      %s235 = smul.u32 4, %s21
      %p236 = scmp.lt.s32.totalorder %s234, 31
      %s237 = scalar_select %p236, %s234, 31
      %p238 = scmp.lt.s32.totalorder %s235, 3
      %s239 = scalar_select %p238, %s235, 3
      %s240 = smul.addr %s237, 4
      %s241 = sadd.s32 %s239, %s240
      %s242 = smul.addr %s241, 4
      %s243 = scalar_lea.vmem %s0, %s242
      %s244 = smul.u32 16, %s19
      %s245 = smul.u32 4, %s21
      %s246 = smul.u32 56, %s21
      %p247 = scmp.lt.s32.totalorder %s246, 55
      %s248 = scalar_select %p247, %s246, 55
      %p249 = scmp.lt.s32.totalorder %s20, 0
      %s250 = scalar_select %p249, %s20, 0
      %s251 = sadd.s32 %s250, %s248
      %s252 = smul.addr %s251, 4
      %s253 = scalar_lea.vmem %s1, %s252
      %s254 = smul.u32 56, %s21
      %p255 = scmp.lt.s32.totalorder %s20, 0
      %s256 = scalar_select %p255, %s20, 0
      %s257 = scalar_lea.vmem %s2, %s256
      %s258 = smul.u32 16, %s19
      %p259 = scmp.lt.s32.totalorder %s258, 31
      %s260 = scalar_select %p259, %s258, 31
      %p261 = scmp.lt.s32.totalorder %s20, 0
      %s262 = scalar_select %p261, %s20, 0
      %s263 = sadd.s32 %s262, %s260
      %s264 = smul.addr %s263, 8
      %s265 = scalar_lea.vmem %s3, %s264
      %s266 = smul.u32 16, %s19
      %v268 = vld [vmem:[%s243] sm:$0xff]
      %v269 = vld [vmem:[%s243 + $0x8] sm:$0xff]
      %v270 = vld [vmem:[%s243 + $0x10] sm:$0xff]
      %v271 = vld [vmem:[%s243 + $0x18] sm:$0xff]
      %v272 = vld [vmem:[%s243 + $0x20] sm:$0xff]
      %v273 = vld [vmem:[%s243 + $0x28] sm:$0xff]
      %v274 = vld [vmem:[%s243 + $0x30] sm:$0xff]
      %v275 = vld [vmem:[%s243 + $0x38] sm:$0xff]
      %v276 = vld [vmem:[%s243 + $0x40] sm:$0xff]
      %v277 = vld [vmem:[%s243 + $0x48] sm:$0xff]
      %v278 = vld [vmem:[%s243 + $0x50] sm:$0xff]
      %v279 = vld [vmem:[%s243 + $0x58] sm:$0xff]
      %v280 = vld [vmem:[%s243 + $0x60] sm:$0xff]
      %v281 = vld [vmem:[%s243 + $0x68] sm:$0xff]
      %v282 = vld [vmem:[%s243 + $0x70] sm:$0xff]
      %v283 = vld [vmem:[%s243 + $0x78] sm:$0xff]
      %v284 = vld [vmem:[%s243 + $0x80] sm:$0xff]
      %v285 = vld [vmem:[%s243 + $0x88] sm:$0xff]
      %v286 = vld [vmem:[%s243 + $0x90] sm:$0xff]
      %v287 = vld [vmem:[%s243 + $0x98] sm:$0xff]
      %v288 = vld [vmem:[%s243 + $0xa0] sm:$0xff]
      %v289 = vld [vmem:[%s243 + $0xa8] sm:$0xff]
      %v290 = vld [vmem:[%s243 + $0xb0] sm:$0xff]
      %v291 = vld [vmem:[%s243 + $0xb8] sm:$0xff]
      %v292 = vld [vmem:[%s243 + $0xc0] sm:$0xff]
      %v293 = vld [vmem:[%s243 + $0xc8] sm:$0xff]
      %v294 = vld [vmem:[%s243 + $0xd0] sm:$0xff]
      %v295 = vld [vmem:[%s243 + $0xd8] sm:$0xff]
      %v296 = vld [vmem:[%s243 + $0xe0] sm:$0xff]
      %v297 = vld [vmem:[%s243 + $0xe8] sm:$0xff]
      %v298 = vld [vmem:[%s243 + $0xf0] sm:$0xff]
      %v299 = vld [vmem:[%s243 + $0xf8] sm:$0xff]
      %v300 = vld [vmem:[%s253] sm:$0xf]
      %v301 = vld [vmem:[%s253 + $0x4] sm:$0xf]
      %v302 = vld [vmem:[%s253 + $0x8] sm:$0xf]
      %v303 = vld [vmem:[%s253 + $0xc] sm:$0xf]
      %v304 = vld [vmem:[%s253 + $0x10] sm:$0xf]
      %v305 = vld [vmem:[%s253 + $0x14] sm:$0xf]
      %v306 = vld [vmem:[%s253 + $0x18] sm:$0xf]
      %v307 = vld [vmem:[%s253 + $0x1c] sm:$0xf]
      %v308 = vld [vmem:[%s253 + $0x20] sm:$0xf]
      %v309 = vld [vmem:[%s253 + $0x24] sm:$0xf]
      %v310 = vld [vmem:[%s253 + $0x28] sm:$0xf]
      %v311 = vld [vmem:[%s253 + $0x2c] sm:$0xf]
      %v312 = vld [vmem:[%s253 + $0x30] sm:$0xf]
      %v313 = vld [vmem:[%s253 + $0x34] sm:$0xf]
      %v314 = vld [vmem:[%s253 + $0x38] sm:$0xf]
      %v315 = vld [vmem:[%s253 + $0x3c] sm:$0xf]
      %v316 = vld [vmem:[%s253 + $0x40] sm:$0xf]
      %v317 = vld [vmem:[%s253 + $0x44] sm:$0xf]
      %v318 = vld [vmem:[%s253 + $0x48] sm:$0xf]
      %v319 = vld [vmem:[%s253 + $0x4c] sm:$0xf]
      %v320 = vld [vmem:[%s253 + $0x50] sm:$0xf]
      %v321 = vld [vmem:[%s253 + $0x54] sm:$0xf]
      %v322 = vld [vmem:[%s253 + $0x58] sm:$0xf]
      %v323 = vld [vmem:[%s253 + $0x5c] sm:$0xf]
      %v324 = vld [vmem:[%s253 + $0x60] sm:$0xf]
      %v325 = vld [vmem:[%s253 + $0x64] sm:$0xf]
      %v326 = vld [vmem:[%s253 + $0x68] sm:$0xf]
      %v327 = vld [vmem:[%s253 + $0x6c] sm:$0xf]
      %v328 = vld [vmem:[%s253 + $0x70] sm:$0xf]
      %v329 = vld [vmem:[%s253 + $0x74] sm:$0xf]
      %v330 = vld [vmem:[%s253 + $0x78] sm:$0xf]
      %v331 = vld [vmem:[%s253 + $0x7c] sm:$0xf]
      %v332 = vld [vmem:[%s253 + $0x80] sm:$0xf]
      %v333 = vld [vmem:[%s253 + $0x84] sm:$0xf]
      %v334 = vld [vmem:[%s253 + $0x88] sm:$0xf]
      %v335 = vld [vmem:[%s253 + $0x8c] sm:$0xf]
      %v336 = vld [vmem:[%s253 + $0x90] sm:$0xf]
      %v337 = vld [vmem:[%s253 + $0x94] sm:$0xf]
      %v338 = vld [vmem:[%s253 + $0x98] sm:$0xf]
      %v339 = vld [vmem:[%s253 + $0x9c] sm:$0xf]
      %v340 = vld [vmem:[%s253 + $0xa0] sm:$0xf]
      %v341 = vld [vmem:[%s253 + $0xa4] sm:$0xf]
      %v342 = vld [vmem:[%s253 + $0xa8] sm:$0xf]
      %v343 = vld [vmem:[%s253 + $0xac] sm:$0xf]
      %v344 = vld [vmem:[%s253 + $0xb0] sm:$0xf]
      %v345 = vld [vmem:[%s253 + $0xb4] sm:$0xf]
      %v346 = vld [vmem:[%s253 + $0xb8] sm:$0xf]
      %v347 = vld [vmem:[%s253 + $0xbc] sm:$0xf]
      %v348 = vld [vmem:[%s253 + $0xc0] sm:$0xf]
      %v349 = vld [vmem:[%s253 + $0xc4] sm:$0xf]
      %v350 = vld [vmem:[%s253 + $0xc8] sm:$0xf]
      %v351 = vld [vmem:[%s253 + $0xcc] sm:$0xf]
      %v352 = vld [vmem:[%s253 + $0xd0] sm:$0xf]
      %v353 = vld [vmem:[%s253 + $0xd4] sm:$0xf]
      %v354 = vld [vmem:[%s253 + $0xd8] sm:$0xf]
      %v355 = vld [vmem:[%s253 + $0xdc] sm:$0x1]
      %v356 = vld [vmem:[%s257] sm:$0x1]
      %v358 = vperm.slane %v356, 0
      %v392 = vunpack.c.l.b16 %v268
      %v393 = vunpack.c.h.b16 %v268
      %v394 = vunpack.c.l.b16 %v269
      %v395 = vunpack.c.h.b16 %v269
      %v396 = vunpack.c.l.b16 %v270
      %v397 = vunpack.c.h.b16 %v270
      %v398 = vunpack.c.l.b16 %v271
      %v399 = vunpack.c.h.b16 %v271
      %v400 = vunpack.c.l.b16 %v272
      %v401 = vunpack.c.h.b16 %v272
      %v402 = vunpack.c.l.b16 %v273
      %v403 = vunpack.c.h.b16 %v273
      %v404 = vunpack.c.l.b16 %v274
      %v405 = vunpack.c.h.b16 %v274
      %v406 = vunpack.c.l.b16 %v275
      %v407 = vunpack.c.h.b16 %v275
      %v408 = vunpack.c.l.b16 %v276
      %v409 = vunpack.c.h.b16 %v276
      %v410 = vunpack.c.l.b16 %v277
      %v411 = vunpack.c.h.b16 %v277
      %v412 = vunpack.c.l.b16 %v278
      %v413 = vunpack.c.h.b16 %v278
      %v414 = vunpack.c.l.b16 %v279
      %v415 = vunpack.c.h.b16 %v279
      %v416 = vunpack.c.l.b16 %v280
      %v417 = vunpack.c.h.b16 %v280
      %v418 = vunpack.c.l.b16 %v281
      %v419 = vunpack.c.h.b16 %v281
      %v420 = vunpack.c.l.b16 %v282
      %v421 = vunpack.c.h.b16 %v282
      %v422 = vunpack.c.l.b16 %v283
      %v423 = vunpack.c.h.b16 %v283
      %v424 = vunpack.c.l.b16 %v284
      %v425 = vunpack.c.h.b16 %v284
      %v426 = vunpack.c.l.b16 %v285
      %v427 = vunpack.c.h.b16 %v285
      %v428 = vunpack.c.l.b16 %v286
      %v429 = vunpack.c.h.b16 %v286
      %v430 = vunpack.c.l.b16 %v287
      %v431 = vunpack.c.h.b16 %v287
      %v432 = vunpack.c.l.b16 %v288
      %v433 = vunpack.c.h.b16 %v288
      %v434 = vunpack.c.l.b16 %v289
      %v435 = vunpack.c.h.b16 %v289
      %v436 = vunpack.c.l.b16 %v290
      %v437 = vunpack.c.h.b16 %v290
      %v438 = vunpack.c.l.b16 %v291
      %v439 = vunpack.c.h.b16 %v291
      %v440 = vunpack.c.l.b16 %v292
      %v441 = vunpack.c.h.b16 %v292
      %v442 = vunpack.c.l.b16 %v293
      %v443 = vunpack.c.h.b16 %v293
      %v444 = vunpack.c.l.b16 %v294
      %v445 = vunpack.c.h.b16 %v294
      %v446 = vunpack.c.l.b16 %v295
      %v447 = vunpack.c.h.b16 %v295
      %v448 = vunpack.c.l.b16 %v296
      %v449 = vunpack.c.h.b16 %v296
      %v450 = vunpack.c.l.b16 %v297
      %v451 = vunpack.c.h.b16 %v297
      %v452 = vunpack.c.l.b16 %v298
      %v453 = vunpack.c.h.b16 %v298
      %v454 = vunpack.c.l.b16 %v299
      %v455 = vunpack.c.h.b16 %v299
      %v456 = vpack.c.b16 %v396, %v392
      %v457 = vpack.c.b16 %v397, %v393
      %v458 = vpack.c.b16 %v398, %v394
      %v459 = vpack.c.b16 %v399, %v395
      %v460 = vpack.c.b16 %v404, %v400
      %v461 = vpack.c.b16 %v405, %v401
      %v462 = vpack.c.b16 %v406, %v402
      %v463 = vpack.c.b16 %v407, %v403
      %v464 = vpack.c.b16 %v412, %v408
      %v465 = vpack.c.b16 %v413, %v409
      %v466 = vpack.c.b16 %v414, %v410
      %v467 = vpack.c.b16 %v415, %v411
      %v468 = vpack.c.b16 %v420, %v416
      %v469 = vpack.c.b16 %v421, %v417
      %v470 = vpack.c.b16 %v422, %v418
      %v471 = vpack.c.b16 %v423, %v419
      %v472 = vpack.c.b16 %v428, %v424
      %v473 = vpack.c.b16 %v429, %v425
      %v474 = vpack.c.b16 %v430, %v426
      %v475 = vpack.c.b16 %v431, %v427
      %v476 = vpack.c.b16 %v436, %v432
      %v477 = vpack.c.b16 %v437, %v433
      %v478 = vpack.c.b16 %v438, %v434
      %v479 = vpack.c.b16 %v439, %v435
      %v480 = vpack.c.b16 %v444, %v440
      %v481 = vpack.c.b16 %v445, %v441
      %v482 = vpack.c.b16 %v446, %v442
      %v483 = vpack.c.b16 %v447, %v443
      %v484 = vpack.c.b16 %v452, %v448
      %v485 = vpack.c.b16 %v453, %v449
      %v486 = vpack.c.b16 %v454, %v450
      %v487 = vpack.c.b16 %v455, %v451
      %v568 = vunpack.c.l.b16 %v300
      %v569 = vunpack.c.l.b16 %v301
      %v570 = vunpack.c.l.b16 %v302
      %v571 = vunpack.c.l.b16 %v303
      %v572 = vunpack.c.l.b16 %v304
      %v573 = vunpack.c.l.b16 %v305
      %v574 = vunpack.c.l.b16 %v306
      %v575 = vunpack.c.l.b16 %v307
      %v576 = vunpack.c.l.b16 %v308
      %v577 = vunpack.c.l.b16 %v309
      %v578 = vunpack.c.l.b16 %v310
      %v579 = vunpack.c.l.b16 %v311
      %v580 = vunpack.c.l.b16 %v312
      %v581 = vunpack.c.l.b16 %v313
      %v582 = vunpack.c.l.b16 %v314
      %v583 = vunpack.c.l.b16 %v315
      %v584 = vunpack.c.l.b16 %v316
      %v585 = vunpack.c.l.b16 %v317
      %v586 = vunpack.c.l.b16 %v318
      %v587 = vunpack.c.l.b16 %v319
      %v588 = vunpack.c.l.b16 %v320
      %v589 = vunpack.c.l.b16 %v321
      %v590 = vunpack.c.l.b16 %v322
      %v591 = vunpack.c.l.b16 %v323
      %v592 = vunpack.c.l.b16 %v324
      %v593 = vunpack.c.l.b16 %v325
      %v594 = vunpack.c.l.b16 %v326
      %v595 = vunpack.c.l.b16 %v327
      %v596 = vunpack.c.l.b16 %v328
      %v597 = vunpack.c.l.b16 %v329
      %v598 = vunpack.c.l.b16 %v330
      %v599 = vunpack.c.l.b16 %v331
      %v600 = vunpack.c.l.b16 %v332
      %v601 = vunpack.c.l.b16 %v333
      %v602 = vunpack.c.l.b16 %v334
      %v603 = vunpack.c.l.b16 %v335
      %v604 = vunpack.c.l.b16 %v336
      %v605 = vunpack.c.l.b16 %v337
      %v606 = vunpack.c.l.b16 %v338
      %v607 = vunpack.c.l.b16 %v339
      %v608 = vunpack.c.l.b16 %v340
      %v609 = vunpack.c.l.b16 %v341
      %v610 = vunpack.c.l.b16 %v342
      %v611 = vunpack.c.l.b16 %v343
      %v612 = vunpack.c.l.b16 %v344
      %v613 = vunpack.c.l.b16 %v345
      %v614 = vunpack.c.l.b16 %v346
      %v615 = vunpack.c.l.b16 %v347
      %v616 = vunpack.c.l.b16 %v348
      %v617 = vunpack.c.l.b16 %v349
      %v618 = vunpack.c.l.b16 %v350
      %v619 = vunpack.c.l.b16 %v351
      %v620 = vunpack.c.l.b16 %v352
      %v621 = vunpack.c.l.b16 %v353
      %v622 = vunpack.c.l.b16 %v354
      %v623 = vunpack.c.l.b16 %v355
      %v624 = vpack.c.b16 %v569, %v568
      %v625 = vpack.c.b16 %v571, %v570
      %v626 = vpack.c.b16 %v573, %v572
      %v627 = vpack.c.b16 %v575, %v574
      %v628 = vpack.c.b16 %v577, %v576
      %v629 = vpack.c.b16 %v579, %v578
      %v630 = vpack.c.b16 %v581, %v580
      %v631 = vpack.c.b16 %v583, %v582
      %v632 = vpack.c.b16 %v585, %v584
      %v633 = vpack.c.b16 %v587, %v586
      %v634 = vpack.c.b16 %v589, %v588
      %v635 = vpack.c.b16 %v591, %v590
      %v636 = vpack.c.b16 %v593, %v592
      %v637 = vpack.c.b16 %v595, %v594
      %v638 = vpack.c.b16 %v597, %v596
      %v639 = vpack.c.b16 %v599, %v598
      %v640 = vpack.c.b16 %v601, %v600
      %v641 = vpack.c.b16 %v603, %v602
      %v642 = vpack.c.b16 %v605, %v604
      %v643 = vpack.c.b16 %v607, %v606
      %v644 = vpack.c.b16 %v609, %v608
      %v645 = vpack.c.b16 %v611, %v610
      %v646 = vpack.c.b16 %v613, %v612
      %v647 = vpack.c.b16 %v615, %v614
      %v648 = vpack.c.b16 %v617, %v616
      %v649 = vpack.c.b16 %v619, %v618
      %v650 = vpack.c.b16 %v621, %v620
      %v651 = vpack.c.b16 %v623, %v622
      %vm679 = vcmask 465920
      %v681 = vsel %vm679, %v459, 0
      %v684 = vsel %vm679, %v463, 0
      %v687 = vsel %vm679, %v467, 0
      %v690 = vsel %vm679, %v471, 0
      %v693 = vsel %vm679, %v475, 0
      %v696 = vsel %vm679, %v479, 0
      %v699 = vsel %vm679, %v483, 0
      %v702 = vsel %vm679, %v487, 0
      %vm704 = vcmask 1043456
      %vm705 = vcmask 1044480
      %v706 = vsel %vm704, 4294967295, 65535
      %v707 = vsel %vm705, %v706, 0
      %v709 = vand.u32 %v651, %v707
      %711 = vmatpush.bf16.msra.mxu0 %v631
      %712 = vmatpush.bf16.msra.mxu0 %v630
      %713 = vmatpush.bf16.msra.mxu0 %v629
      %714 = vmatpush.bf16.msra.mxu0 %v628
      %715 = vmatpush.bf16.msra.mxu0 %v627
      %716 = vmatpush.bf16.msra.mxu0 %v626
      %717 = vmatpush.bf16.msra.mxu0 %v625
      %718 = vmatpush.bf16.msra.mxu0 %v624
      %719 = vmatmul.bf16.gmra.mxu0 %v456
      %v720 = vpop.f32.mrf.mxu0
      %v721 = vadd.f32 %v358, %v720
      %v722 = vpop.f32.mrf.mxu0
      %v723 = vadd.f32 %v358, %v722
      %724 = vmatmul.bf16.gmra.mxu0 %v460
      %v725 = vpop.f32.mrf.mxu0
      %v726 = vadd.f32 %v358, %v725
      %v727 = vpop.f32.mrf.mxu0
      %v728 = vadd.f32 %v358, %v727
      %729 = vmatmul.bf16.gmra.mxu0 %v464
      %v730 = vpop.f32.mrf.mxu0
      %v731 = vadd.f32 %v358, %v730
      %v732 = vpop.f32.mrf.mxu0
      %v733 = vadd.f32 %v358, %v732
      %734 = vmatmul.bf16.gmra.mxu0 %v468
      %v735 = vpop.f32.mrf.mxu0
      %v736 = vadd.f32 %v358, %v735
      %v737 = vpop.f32.mrf.mxu0
      %v738 = vadd.f32 %v358, %v737
      %739 = vmatmul.bf16.gmra.mxu0 %v472
      %v740 = vpop.f32.mrf.mxu0
      %v741 = vadd.f32 %v358, %v740
      %v742 = vpop.f32.mrf.mxu0
      %v743 = vadd.f32 %v358, %v742
      %744 = vmatmul.bf16.gmra.mxu0 %v476
      %v745 = vpop.f32.mrf.mxu0
      %v746 = vadd.f32 %v358, %v745
      %v747 = vpop.f32.mrf.mxu0
      %v748 = vadd.f32 %v358, %v747
      %749 = vmatmul.bf16.gmra.mxu0 %v480
      %v750 = vpop.f32.mrf.mxu0
      %v751 = vadd.f32 %v358, %v750
      %v752 = vpop.f32.mrf.mxu0
      %v753 = vadd.f32 %v358, %v752
      %754 = vmatmul.bf16.gmra.mxu0 %v484
      %v755 = vpop.f32.mrf.mxu0
      %v756 = vadd.f32 %v358, %v755
      %v757 = vpop.f32.mrf.mxu0
      %v758 = vadd.f32 %v358, %v757
      %759 = vdwg.mxu0
      %760 = vmatpush.bf16.msra.mxu0 %v639
      %761 = vmatpush.bf16.msra.mxu0 %v638
      %762 = vmatpush.bf16.msra.mxu0 %v637
      %763 = vmatpush.bf16.msra.mxu0 %v636
      %764 = vmatpush.bf16.msra.mxu0 %v635
      %765 = vmatpush.bf16.msra.mxu0 %v634
      %766 = vmatpush.bf16.msra.mxu0 %v633
      %767 = vmatpush.bf16.msra.mxu0 %v632
      %768 = vmatmul.bf16.gmra.mxu0 %v457
      %v769 = vpop.f32.mrf.mxu0
      %v770 = vadd.f32 %v721, %v769
      %v771 = vpop.f32.mrf.mxu0
      %v772 = vadd.f32 %v723, %v771
      %773 = vmatmul.bf16.gmra.mxu0 %v461
      %v774 = vpop.f32.mrf.mxu0
      %v775 = vadd.f32 %v726, %v774
      %v776 = vpop.f32.mrf.mxu0
      %v777 = vadd.f32 %v728, %v776
      %778 = vmatmul.bf16.gmra.mxu0 %v465
      %v779 = vpop.f32.mrf.mxu0
      %v780 = vadd.f32 %v731, %v779
      %v781 = vpop.f32.mrf.mxu0
      %v782 = vadd.f32 %v733, %v781
      %783 = vmatmul.bf16.gmra.mxu0 %v469
      %v784 = vpop.f32.mrf.mxu0
      %v785 = vadd.f32 %v736, %v784
      %v786 = vpop.f32.mrf.mxu0
      %v787 = vadd.f32 %v738, %v786
      %788 = vmatmul.bf16.gmra.mxu0 %v473
      %v789 = vpop.f32.mrf.mxu0
      %v790 = vadd.f32 %v741, %v789
      %v791 = vpop.f32.mrf.mxu0
      %v792 = vadd.f32 %v743, %v791
      %793 = vmatmul.bf16.gmra.mxu0 %v477
      %v794 = vpop.f32.mrf.mxu0
      %v795 = vadd.f32 %v746, %v794
      %v796 = vpop.f32.mrf.mxu0
      %v797 = vadd.f32 %v748, %v796
      %798 = vmatmul.bf16.gmra.mxu0 %v481
      %v799 = vpop.f32.mrf.mxu0
      %v800 = vadd.f32 %v751, %v799
      %v801 = vpop.f32.mrf.mxu0
      %v802 = vadd.f32 %v753, %v801
      %803 = vmatmul.bf16.gmra.mxu0 %v485
      %v804 = vpop.f32.mrf.mxu0
      %v805 = vadd.f32 %v756, %v804
      %v806 = vpop.f32.mrf.mxu0
      %v807 = vadd.f32 %v758, %v806
      %808 = vdwg.mxu0
      %809 = vmatpush.bf16.msra.mxu0 %v647
      %810 = vmatpush.bf16.msra.mxu0 %v646
      %811 = vmatpush.bf16.msra.mxu0 %v645
      %812 = vmatpush.bf16.msra.mxu0 %v644
      %813 = vmatpush.bf16.msra.mxu0 %v643
      %814 = vmatpush.bf16.msra.mxu0 %v642
      %815 = vmatpush.bf16.msra.mxu0 %v641
      %816 = vmatpush.bf16.msra.mxu0 %v640
      %817 = vmatmul.bf16.gmra.mxu0 %v458
      %v818 = vpop.f32.mrf.mxu0
      %v819 = vadd.f32 %v770, %v818
      %v820 = vpop.f32.mrf.mxu0
      %v821 = vadd.f32 %v772, %v820
      %822 = vmatmul.bf16.gmra.mxu0 %v462
      %v823 = vpop.f32.mrf.mxu0
      %v824 = vadd.f32 %v775, %v823
      %v825 = vpop.f32.mrf.mxu0
      %v826 = vadd.f32 %v777, %v825
      %827 = vmatmul.bf16.gmra.mxu0 %v466
      %v828 = vpop.f32.mrf.mxu0
      %v829 = vadd.f32 %v780, %v828
      %v830 = vpop.f32.mrf.mxu0
      %v831 = vadd.f32 %v782, %v830
      %832 = vmatmul.bf16.gmra.mxu0 %v470
      %v833 = vpop.f32.mrf.mxu0
      %v834 = vadd.f32 %v785, %v833
      %v835 = vpop.f32.mrf.mxu0
      %v836 = vadd.f32 %v787, %v835
      %837 = vmatmul.bf16.gmra.mxu0 %v474
      %v838 = vpop.f32.mrf.mxu0
      %v839 = vadd.f32 %v790, %v838
      %v840 = vpop.f32.mrf.mxu0
      %v841 = vadd.f32 %v792, %v840
      %842 = vmatmul.bf16.gmra.mxu0 %v478
      %v843 = vpop.f32.mrf.mxu0
      %v844 = vadd.f32 %v795, %v843
      %v845 = vpop.f32.mrf.mxu0
      %v846 = vadd.f32 %v797, %v845
      %847 = vmatmul.bf16.gmra.mxu0 %v482
      %v848 = vpop.f32.mrf.mxu0
      %v849 = vadd.f32 %v800, %v848
      %v850 = vpop.f32.mrf.mxu0
      %v851 = vadd.f32 %v802, %v850
      %852 = vmatmul.bf16.gmra.mxu0 %v486
      %v853 = vpop.f32.mrf.mxu0
      %v854 = vadd.f32 %v805, %v853
      %v855 = vpop.f32.mrf.mxu0
      %v856 = vadd.f32 %v807, %v855
      %857 = vdwg.mxu0
      %858 = vmatpush.bf16.msra.mxu0 0
      %859 = vmatpush.bf16.msra.mxu0 0
      %860 = vmatpush.bf16.msra.mxu0 0
      %861 = vmatpush.bf16.msra.mxu0 0
      %862 = vmatpush.bf16.msra.mxu0 %v709
      %863 = vmatpush.bf16.msra.mxu0 %v650
      %864 = vmatpush.bf16.msra.mxu0 %v649
      %865 = vmatpush.bf16.msra.mxu0 %v648
      %866 = vmatmul.bf16.gmra.mxu0 %v681
      %v867 = vpop.f32.mrf.mxu0
      %v868 = vadd.f32 %v819, %v867
      %v869 = vpop.f32.mrf.mxu0
      %v870 = vadd.f32 %v821, %v869
      %871 = vmatmul.bf16.gmra.mxu0 %v684
      %v872 = vpop.f32.mrf.mxu0
      %v873 = vadd.f32 %v824, %v872
      %v874 = vpop.f32.mrf.mxu0
      %v875 = vadd.f32 %v826, %v874
      %876 = vmatmul.bf16.gmra.mxu0 %v687
      %v877 = vpop.f32.mrf.mxu0
      %v878 = vadd.f32 %v829, %v877
      %v879 = vpop.f32.mrf.mxu0
      %v880 = vadd.f32 %v831, %v879
      %881 = vmatmul.bf16.gmra.mxu0 %v690
      %v882 = vpop.f32.mrf.mxu0
      %v883 = vadd.f32 %v834, %v882
      %v884 = vpop.f32.mrf.mxu0
      %v885 = vadd.f32 %v836, %v884
      %886 = vmatmul.bf16.gmra.mxu0 %v693
      %v887 = vpop.f32.mrf.mxu0
      %v888 = vadd.f32 %v839, %v887
      %v889 = vpop.f32.mrf.mxu0
      %v890 = vadd.f32 %v841, %v889
      %891 = vmatmul.bf16.gmra.mxu0 %v696
      %v892 = vpop.f32.mrf.mxu0
      %v893 = vadd.f32 %v844, %v892
      %v894 = vpop.f32.mrf.mxu0
      %v895 = vadd.f32 %v846, %v894
      %896 = vmatmul.bf16.gmra.mxu0 %v699
      %v897 = vpop.f32.mrf.mxu0
      %v898 = vadd.f32 %v849, %v897
      %v899 = vpop.f32.mrf.mxu0
      %v900 = vadd.f32 %v851, %v899
      %901 = vmatmul.bf16.gmra.mxu0 %v702
      %v902 = vpop.f32.mrf.mxu0
      %v903 = vadd.f32 %v854, %v902
      %v904 = vpop.f32.mrf.mxu0
      %v905 = vadd.f32 %v856, %v904
      %906 = vdwg.mxu0
      %v907 = vmax.f32 %v868, 0.0
      %v908 = vmax.f32 %v870, 0.0
      %v909 = vmax.f32 %v873, 0.0
      %v910 = vmax.f32 %v875, 0.0
      %v911 = vmax.f32 %v878, 0.0
      %v912 = vmax.f32 %v880, 0.0
      %v913 = vmax.f32 %v883, 0.0
      %v914 = vmax.f32 %v885, 0.0
      %v915 = vmax.f32 %v888, 0.0
      %v916 = vmax.f32 %v890, 0.0
      %v917 = vmax.f32 %v893, 0.0
      %v918 = vmax.f32 %v895, 0.0
      %v919 = vmax.f32 %v898, 0.0
      %v920 = vmax.f32 %v900, 0.0
      %v921 = vmax.f32 %v903, 0.0
      %v922 = vmax.f32 %v905, 0.0
      %vm923 = vcmask 523264
      %924 = vst.msk [vmem:[%s265] sm:$0xff] %vm923, %v907
      %925 = vst.msk [vmem:[%s265 + $0x8] sm:$0xff] %vm923, %v908
      %926 = vst.msk [vmem:[%s265 + $0x10] sm:$0xff] %vm923, %v909
      %927 = vst.msk [vmem:[%s265 + $0x18] sm:$0xff] %vm923, %v910
      %928 = vst.msk [vmem:[%s265 + $0x20] sm:$0xff] %vm923, %v911
      %929 = vst.msk [vmem:[%s265 + $0x28] sm:$0xff] %vm923, %v912
      %930 = vst.msk [vmem:[%s265 + $0x30] sm:$0xff] %vm923, %v913
      %931 = vst.msk [vmem:[%s265 + $0x38] sm:$0xff] %vm923, %v914
      %932 = vst.msk [vmem:[%s265 + $0x40] sm:$0xff] %vm923, %v915
      %933 = vst.msk [vmem:[%s265 + $0x48] sm:$0xff] %vm923, %v916
      %934 = vst.msk [vmem:[%s265 + $0x50] sm:$0xff] %vm923, %v917
      %935 = vst.msk [vmem:[%s265 + $0x58] sm:$0xff] %vm923, %v918
      %936 = vst.msk [vmem:[%s265 + $0x60] sm:$0xff] %vm923, %v919
      %937 = vst.msk [vmem:[%s265 + $0x68] sm:$0xff] %vm923, %v920
      %938 = vst.msk [vmem:[%s265 + $0x70] sm:$0xff] %vm923, %v921
      %939 = vst.msk [vmem:[%s265 + $0x78] sm:$0xff] %vm923, %v922
      %s940 = smul.u32 16, %s19
      %p941 = scmp.lt.s32.totalorder %s940, 31
      %s942 = scalar_select %p941, %s940, 31
      %p943 = scmp.lt.s32.totalorder %s20, 0
      %s944 = scalar_select %p943, %s20, 0
      %s945 = sadd.s32 %s944, %s942
      %s946 = smul.addr %s945, 8
      %s947 = scalar_lea.vmem %s3, %s946
      // Predicated region
      $region33: #{tpu_custom_call.1} parent=31 // pred_check
        %p948 = pneg %p135
      $region34: #{tpu_custom_call.1} parent=31 // pred_check_branch
        %950 = sbr.rel (%p948) target = $region36
      $region35: #{tpu_custom_call.1} parent=31 // pred_region
        %s951 = smul.u32 16, %s19
      $region36: #{tpu_custom_call.1} parent=31 // pred_fallthru
        _
    $region32: #{tpu_custom_call.1} parent=5 // pred_fallthru
      _
    %p952 = scmp.le.s32.totalorder 2, %s9
    // Predicated region
    $region37: #{tpu_custom_call.1} parent=5 // pred_check
      %p953 = pneg %p952
    $region38: #{tpu_custom_call.1} parent=5 // pred_check_branch
      %955 = sbr.rel (%p953) target = $region40
    $region39: #{tpu_custom_call.1} parent=5 // pred_region
      %s956 = ssub.s32 %s9, 2
      // Predicated region
      $region41: #{tpu_custom_call.1} parent=39 // pred_check
        %p957 = pneg %p141
      $region42: #{tpu_custom_call.1} parent=39 // pred_check_branch
        %959 = sbr.rel (%p957) target = $region44
      $region43: #{tpu_custom_call.1} parent=39 // pred_region
        %s960 = smul.u32 16, %s22
        %p961 = scmp.lt.s32.totalorder %s960, 31
        %s962 = scalar_select %p961, %s960, 31
        %p963 = scmp.lt.s32.totalorder %s23, 0
        %s964 = scalar_select %p963, %s23, 0
        %s965 = sadd.s32 %s964, %s962
        %s966 = smul.addr %s965, 8
        %s967 = scalar_lea.vmem %s3, %s966
      $region44: #{tpu_custom_call.1} parent=39 // pred_fallthru
        _
    $region40: #{tpu_custom_call.1} parent=5 // pred_fallthru
      _
  $region6: #{tpu_custom_call.1} parent=0 // loop_footer
    %s13 = sadd.s32 1, %s9
  $region7: #{tpu_custom_call.1} parent=0 // loop_footer_branch
    %8 = sbr.rel target = $region3
  $region8: #{tpu_custom_call.1} parent=0 // loop_exit
    _

</llo_original>
